<compile_context>
chip_gen: v7x
topology: tpu7x:2x2x1
jax: 0.10.0
libtpu: 0.0.40
codegen_flags: <defaults>
</compile_context>

<pallas_src>
import jax
import jax.numpy as jnp
from jax import lax
from jax.experimental import pallas as pl
from jax.experimental.pallas import tpu as pltpu

LANES = 128
GROUP = LANES // 4            # 32 batch entries packed per lane-dense output row
_CHUNK = 256                  # rows stored per inner step inside the kernel
MAX_ROW_TILE = 4096           # 4096 * 128 * 4 B = 2 MiB per f32 output tile
MIN_SPLIT_ROWS = 2 * _CHUNK   # below this a single full-array block is cheapest
PALLAS_MIN_BATCH = 8192       # below this the fused XLA broadcast fast path wins


def _varyer_kernel(p_ref, o_ref):
    # p_ref: (1, LANES)     pre-tiled params row (32 copies of the 4-vector)
    # o_ref: (rows, LANES)  lane-dense output tile
    nrows = o_ref.shape[0]
    row = p_ref[...]
    if nrows % _CHUNK == 0:
        # Chunked full-vreg stores from one replicated source block: guards
        # against vreg-pressure spills when the tile is thousands of rows.
        src = jnp.broadcast_to(row, (_CHUNK, LANES))

        def body(i, carry):
            start = pl.multiple_of(i * _CHUNK, _CHUNK)
            o_ref[pl.ds(start, _CHUNK), :] = src
            return carry

        lax.fori_loop(0, nrows // _CHUNK, body, 0, unroll=True)
    else:
        # Small single-block case (<= MIN_SPLIT_ROWS rows): one broadcast store.
        o_ref[...] = jnp.broadcast_to(row, o_ref.shape)


def _fixed_varyer_pallas(batch: int, params: jax.Array) -> jax.Array:
    dtype = params.dtype
    itemsize = jnp.dtype(dtype).itemsize
    sublane = max(8, 32 // itemsize)  # 8 for f32, 16 for bf16, 32 for int8

    # Rows of the lane-dense slab, rounded only to the sublane granularity
    # (<= 3.5 KiB of extra writeback, vs up to ~2x with tile-sized padding).
    rows = pl.cdiv(batch, GROUP)
    rows = ((rows + sublane - 1) // sublane) * sublane

    if rows < MIN_SPLIT_ROWS:
        row_tile = rows               # single full-array block
    else:
        # >= 2 grid steps (v7x megacore shares the writeback), each a multiple
        # of _CHUNK rows and at most MAX_ROW_TILE (2 MiB f32; 2x double-buffered
        # = 4 MiB, under the v5e 16 MiB / v6e 32 MiB / v7x 32 MiB scoped VMEM).
        half = pl.cdiv(rows, 2)
        row_tile = min(MAX_ROW_TILE, ((half + _CHUNK - 1) // _CHUNK) * _CHUNK)
    grid_rows = pl.cdiv(rows, row_tile)   # ragged last block is clipped by Pallas

    # Pre-tile params to one full 128-lane row (hoisted out of the kernel).
    p_tiled = jnp.tile(params, GROUP).reshape(1, LANES)

    dense = pl.pallas_call(
        _varyer_kernel,
        out_shape=jax.ShapeDtypeStruct((rows, LANES), dtype),
        grid=(grid_rows,),
        in_specs=[pl.BlockSpec((1, LANES), lambda i: (0, 0))],
        out_specs=pl.BlockSpec((row_tile, LANES), lambda i: (i, 0)),
        compiler_params=pltpu.CompilerParams(
            dimension_semantics=("parallel",),
        ),
        cost_estimate=pl.CostEstimate(
            flops=0,
            transcendentals=0,
            bytes_accessed=(rows * LANES + LANES) * itemsize,
        ),
    )(p_tiled)

    # Contiguous reshape back to (B, 4); trailing slice only if padding exists.
    out = dense.reshape(rows * GROUP, 4)
    if rows * GROUP != batch:
        out = out[:batch]
    return out


def fixed_varyer(x: jax.Array, params: jax.Array, *, use_pallas=None) -> jax.Array:
    """Pallas equivalent of FixedVaryer.forward.

    Args:
      x: (B, ...) input; only its static batch size B is used.
      params: (4,) parameter vector [raw_omega, delta, raw_phi, raw_time].
      use_pallas: None = auto (fast path for small B), True/False = force.

    Returns:
      (B, 4) array: params broadcast over the batch dimension.
    """
    batch = x.shape[0]
    dtype = params.dtype
    if batch == 0:
        return jnp.zeros((0, 4), dtype=dtype)
    if use_pallas is None:
        use_pallas = batch >= PALLAS_MIN_BATCH
    if not use_pallas:
        # Small-batch fast path: the whole op is launch overhead; a fused XLA
        # broadcast is strictly cheaper than a custom call.
        return jnp.broadcast_to(params[None, :], (batch, 4))
    return _fixed_varyer_pallas(batch, params)


if __name__ == "__main__":
    key = jax.random.PRNGKey(0)
    k_x, k_p = jax.random.split(key)

    # Small shapes consistent with the module: x only contributes batch size.
    B, C, H, W = 2, 4, 16, 16
    x = jax.random.normal(k_x, (B, C, H, W), dtype=jnp.float32)
    params = jax.random.normal(k_p, (4,), dtype=jnp.float32)
    ref = jnp.broadcast_to(params[None, :], (B, 4))

    # 1) Default path (small batch -> XLA broadcast fast path).
    out_fast = jax.block_until_ready(fixed_varyer(x, params))
    assert out_fast.shape == (B, 4) and out_fast.dtype == params.dtype
    assert bool(jnp.allclose(out_fast, ref))

    # 2) Force the Pallas kernel at the same small shape (single-block path).
    out_pl = jax.block_until_ready(fixed_varyer(x, params, use_pallas=True))
    assert out_pl.shape == (B, 4) and out_pl.dtype == params.dtype
    assert bool(jnp.allclose(out_pl, ref))

    # 3) Batch not divisible by 32: exercises the trailing-slice path.
    B2 = 100
    x2 = jnp.zeros((B2, C, H, W), dtype=jnp.float32)
    out2 = jax.block_until_ready(fixed_varyer(x2, params, use_pallas=True))
    assert out2.shape == (B2, 4)
    assert bool(jnp.allclose(out2, jnp.broadcast_to(params[None, :], (B2, 4))))

    # 4) Larger batch: exercises the multi-step "parallel" grid, the in-kernel
    #    chunked stores and the ragged last output block.  Only the batch dim
    #    of x matters, so keep the feature dims tiny to stay cheap.
    B3 = 20000
    x3 = jnp.zeros((B3, 1, 1, 1), dtype=jnp.float32)
    out3 = jax.block_until_ready(fixed_varyer(x3, params))
    assert out3.shape == (B3, 4)
    assert bool(jnp.allclose(out3, jnp.broadcast_to(params[None, :], (B3, 4))))

    # 5) Empty-batch edge case.
    x0 = jnp.zeros((0, C, H, W), dtype=jnp.float32)
    out0 = jax.block_until_ready(fixed_varyer(x0, params))
    assert out0.shape == (0, 4)

    print("KERNEL_OK")
</pallas_src>

<mosaic_0001>
module attributes {stable_mosaic.version = 11 : i64} {
  func.func @_varyer_kernel(%arg0: i32, %arg1: memref<1x128xf32, #tpu.memory_space<vmem>>, %arg2: memref<8x128xf32, #tpu.memory_space<vmem>>) attributes {dimension_semantics = [#tpu.dimension_semantics<parallel>], iteration_bounds = array<i64: 1>, scalar_prefetch = 0 : i64, scratch_operands = 0 : i64, tpu.core_type = #tpu.core_type<tc>, window_params = [{pipeline_mode = #tpu.pipeline_mode<synchronous>, transform_indices = @transform_0, window_bounds = array<i64: 1, 128>}, {transform_indices = @transform_1, window_bounds = array<i64: 8, 128>}]} {
    %c0 = arith.constant 0 : index
    %c0_0 = arith.constant 0 : index
    %0 = vector.load %arg1[%c0, %c0_0] : memref<1x128xf32, #tpu.memory_space<vmem>>, vector<1x128xf32>
    %1 = vector.shape_cast %0 : vector<1x128xf32> to vector<1x128xf32>
    %2 = vector.broadcast %1 : vector<1x128xf32> to vector<8x128xf32>
    %c0_1 = arith.constant 0 : index
    %c0_2 = arith.constant 0 : index
    %3 = vector.load %arg2[%c0_1, %c0_2] : memref<8x128xf32, #tpu.memory_space<vmem>>, vector<8x128xf32>
    tpu.vector_store %arg2[%c0_1, %c0_2], %2 {strides = array<i32>} : memref<8x128xf32, #tpu.memory_space<vmem>>, vector<8x128xf32>,
    return
  }
  func.func @transform_0(%arg0: i32) -> (i32, i32) {
    %c0_i32 = arith.constant 0 : i32
    %c0_i32_0 = arith.constant 0 : i32
    %c0_i32_1 = arith.constant 0 : i32
    return %c0_i32, %c0_i32_0 : i32, i32
  }
  func.func @transform_1(%arg0: i32) -> (i32, i32) {
    %c0_i32 = arith.constant 0 : i32
    %c0_i32_0 = arith.constant 0 : i32
    return %arg0, %c0_i32 : i32, i32
  }
}

</mosaic_0001>

<llo_original>
// kernel: tpu_custom_call.1
$region0: #{tpu_custom_call.1}
  #allocation0 [shape = 'u32[]', space=smem, size = 0x4, offset = 0x4, fixed_abs, tag = 'smem constant byte address 0x4 - core index']
  #allocation1 [shape = 'u32[144,128]{1,0:T(1,128)}', space=vmem, size = 0x12000, scoped, tag = 'internal scratch']
  %s0 = inlined_call_operand.hbm [shape: f32[1,128], index: 0, kind: input, shape index: {}]
  %s1 = inlined_call_operand.hbm [shape: f32[8,128], index: 1, kind: output, shape index: {}]
  %s2 = sld [smem:[#allocation0]]
  $region18: #{tpu_custom_call.1} parent=0
    _
  %s4 = ssub.s32 1, %s2
  %s5 = scalar_select 0, %s4, %s2
  $region1: #{tpu_custom_call.1} parent=0
    #allocation2 [shape = 'u8[512]{0}', space=vmem, size = 0x400, scoped, tag = 'input window, operand 0, single buffered']
    #allocation3 [shape = 's32[1]{0}', space=sflag, size = 0x4, scoped, tag = 'scoped memory for tpu_custom_call.1']
    #allocation4 [shape = 's32[1]{0}', space=sflag, size = 0x4, scoped, tag = 'scoped memory for tpu_custom_call.1']
    #allocation5 [shape = 'u8[4096]{0}', space=vmem, size = 0x1000, scoped, tag = 'output window, operand 0, single buffered']
    %6 = vsyncpa [#allocation3], 0
    %7 = vsyncpa [#allocation4], 0
    // Predicated region
    $region2: #{tpu_custom_call.1} parent=1 // pred_check
      _
    $region3: #{tpu_custom_call.1} parent=1 // pred_check_branch
      %9 = sbr.rel (0) target = $region5
    $region4: #{tpu_custom_call.1} parent=1 // pred_region
      %s11 = ssub.s32 16, 16
      %12 = vsyncadd [#allocation3], %s11
      %s14 = sshll.u32 [#allocation2], 4
      %s15 = int_to_ptr.vmem [resolvable:$true] %s14
      %17 = dma.hbm_to_vmem [thread:$0]  %s0, 16, %s15, [#allocation3]
    $region5: #{tpu_custom_call.1} parent=1 // pred_fallthru
      _
    // Predicated region
    $region6: #{tpu_custom_call.1} parent=1 // pred_check
      _
    $region7: #{tpu_custom_call.1} parent=1 // pred_check_branch
      %19 = sbr.rel (0) target = $region9
    $region8: #{tpu_custom_call.1} parent=1 // pred_region
      %20 = dma.done [#allocation3], 16
    $region9: #{tpu_custom_call.1} parent=1 // pred_fallthru
      _
    %v21 = vld [vmem:[#allocation2] sm:$0x1]
    %v23 = vlaneseq
    %v24 = vshrl.u32 %v23, 7
    %v25 = vsub.s32 0, %v24
    %v26 = vrot.slane %v21, %v25
    %28 = vst [vmem:[#allocation5] sm:$0xff] %v26
    // Predicated region
    $region10: #{tpu_custom_call.1} parent=1 // pred_check
      _
    $region11: #{tpu_custom_call.1} parent=1 // pred_check_branch
      %30 = sbr.rel (0) target = $region13
    $region12: #{tpu_custom_call.1} parent=1 // pred_region
      %s32 = ssub.s32 128, 128
      %33 = vsyncadd [#allocation4], %s32
      %s35 = sshll.u32 [#allocation5], 4
      %s36 = int_to_ptr.vmem [resolvable:$true] %s35
      %38 = dma.vmem_to_hbm [thread:$0]  %s36, 128, %s1, [#allocation4]
    $region13: #{tpu_custom_call.1} parent=1 // pred_fallthru
      _
    // Predicated region
    $region14: #{tpu_custom_call.1} parent=1 // pred_check
      _
    $region15: #{tpu_custom_call.1} parent=1 // pred_check_branch
      %40 = sbr.rel (0) target = $region17
    $region16: #{tpu_custom_call.1} parent=1 // pred_region
      %41 = dma.done [#allocation4], 128
    $region17: #{tpu_custom_call.1} parent=1 // pred_fallthru
      _
    %42 = vsyncpa [#allocation3], 1
    %43 = vsyncpa [#allocation4], 1

</llo_original>
